<compile_context>
chip_gen: v6e
topology: v6e:2x2x1
jax: 0.10.0
libtpu: 0.0.40
codegen_flags: <defaults>
</compile_context>

<pallas_src>
import functools

import jax
import jax.numpy as jnp
from jax.experimental import pallas as pl
from jax.experimental.pallas import tpu as pltpu


def _rms_l1_kernel(x_ref, y_ref, o_ref, *, rows, tm):
    """Write this block's partial sum of |rms_energy(x_row) - rms_energy(y_row)|."""
    i = pl.program_id(0)

    x = x_ref[...].astype(jnp.float32)   # (tm, N)
    y = y_ref[...].astype(jnp.float32)   # (tm, N)

    # mean(x^2) over the lane axis, kept as (tm, 1) to stay sublane x lane laid out.
    ms_x = jnp.mean(x * x, axis=-1, keepdims=True)
    ms_y = jnp.mean(y * y, axis=-1, keepdims=True)

    # 20*log(max(sqrt(ms), 1e-8)) == 10*log(max(ms, 1e-16))  (fold sqrt into log)
    e_x = 10.0 * jnp.log(jnp.maximum(ms_x, 1e-16))
    e_y = 10.0 * jnp.log(jnp.maximum(ms_y, 1e-16))

    diff = jnp.abs(e_x - e_y)                               # (tm, 1) f32

    # Tail mask: rows past R (last, partial block) contribute 0.
    # Keep this mask AFTER the log/abs and BEFORE the sum (see review notes).
    row_ids = i * tm + jax.lax.broadcasted_iota(jnp.int32, (tm, 1), 0)
    diff = jnp.where(row_ids < rows, diff, 0.0)

    o_ref[0, 0] = jnp.sum(diff)


def _sublane_multiple(dtype):
    itemsize = jnp.dtype(dtype).itemsize
    return max(8, 32 // itemsize)       # f32 -> 8, bf16 -> 16, int8/fp8 -> 32


def _vmem_capacity_bytes():
    """Physical VMEM per core; conservative (v7x) fallback if query fails."""
    try:
        info = pltpu.get_tpu_info()
        cap = getattr(info, "vmem_capacity_bytes", None)
        if cap:
            return int(cap)
    except Exception:
        pass
    return 64 << 20


def _generation_budget():
    cap = _vmem_capacity_bytes()
    if cap >= (100 << 20):
        # v5e / v6e: 128 MiB VMEM -> big tiles, generous scoped-VMEM ceiling.
        return {"target_block": 8 << 20, "max_block": 12 << 20,
                "vmem_ceiling": 80 << 20}
    # v7x (64 MiB per TensorCore) or unknown -> stay conservative.
    return {"target_block": 6 << 20, "max_block": 8 << 20,
            "vmem_ceiling": 48 << 20}


def _per_elem_footprint_bytes(dtype):
    itemsize = jnp.dtype(dtype).itemsize
    # 2 inputs x 2 pipeline buffers in the native dtype, plus ~3 full-block f32
    # intermediates (x cast, y cast, square) so bf16/int8 inputs are not
    # under-provisioned when the tiles get large.
    return 4 * itemsize + 3 * 4


def _pick_tm(rows, n, dtype):
    """Pick a row-tile size: generation-aware block budget, sublane-aligned."""
    budget = _generation_budget()
    sub = _sublane_multiple(dtype)
    itemsize = jnp.dtype(dtype).itemsize
    row_bytes_native = max(1, n * itemsize)
    row_bytes_foot = max(1, n * _per_elem_footprint_bytes(dtype))

    # Target / cap on the per-input block size (native-dtype bytes in HBM->VMEM DMA).
    tm = (budget["target_block"] // row_bytes_native) // sub * sub
    tm_cap = (budget["max_block"] // row_bytes_native) // sub * sub
    tm = min(max(tm, sub), max(tm_cap, sub))

    # Total-footprint guard: pipeline buffers + f32 temps + headroom must fit
    # under the vmem_limit ceiling we will request for this generation.
    headroom = 4 << 20
    tm_vmem = ((budget["vmem_ceiling"] - headroom) // row_bytes_foot) // sub * sub
    if tm_vmem >= sub:
        tm = min(tm, tm_vmem)

    # Don't make the tile larger than the (sublane-padded) number of rows.
    rows_padded = ((rows + sub - 1) // sub) * sub
    tm = min(tm, rows_padded)
    return int(max(tm, sub))


@functools.partial(jax.jit, static_argnames=("tm",))
def _rms_energy_error_sum(x2d, y2d, tm):
    R, N = x2d.shape
    num_blocks = pl.cdiv(R, tm)
    itemsize = jnp.dtype(x2d.dtype).itemsize

    budget = _generation_budget()
    # Pipeline buffers (native dtype) + f32 intermediates + headroom.
    footprint = tm * N * _per_elem_footprint_bytes(x2d.dtype) + (4 << 20)
    vmem_limit = int(min(max(footprint, 16 << 20), budget["vmem_ceiling"]))

    kernel = functools.partial(_rms_l1_kernel, rows=R, tm=tm)

    cost = pl.CostEstimate(
        flops=int(4 * R * N),                               # square + accumulate, x and y
        transcendentals=int(2 * R),                         # two logs per row
        bytes_accessed=int(2 * R * N * itemsize + 4 * num_blocks),
    )

    partials = pl.pallas_call(
        kernel,
        out_shape=jax.ShapeDtypeStruct((num_blocks, 1), jnp.float32),
        grid_spec=pltpu.PrefetchScalarGridSpec(
            num_scalar_prefetch=0,
            grid=(num_blocks,),
            in_specs=[
                pl.BlockSpec((tm, N), lambda i: (i, 0)),
                pl.BlockSpec((tm, N), lambda i: (i, 0)),
            ],
            # One partial sum per block -> distinct output blocks -> "parallel" legal.
            out_specs=pl.BlockSpec((1, 1), lambda i: (i, 0),
                                   memory_space=pltpu.SMEM),
        ),
        compiler_params=pltpu.CompilerParams(
            dimension_semantics=("parallel",),
            vmem_limit_bytes=vmem_limit,
        ),
        cost_estimate=cost,
    )(x2d, y2d)

    return jnp.sum(partials)


def rms_energy_error(inp, tgt, tm=None):
    """Pallas equivalent of RMSEnergyError().forward(input, target)."""
    assert inp.shape == tgt.shape
    n_last = inp.shape[-1]
    x2d = inp.reshape(-1, n_last)
    y2d = tgt.reshape(-1, n_last)
    r = x2d.shape[0]
    if tm is None:
        tm = _pick_tm(r, n_last, x2d.dtype)
    total = _rms_energy_error_sum(x2d, y2d, tm=tm)
    # l1_loss default reduction='mean' over all elements of the RMS arrays.
    return total / jnp.float32(r)


def _reference(inp, tgt):
    def rms_energy(x):
        rms = jnp.sqrt(jnp.mean(x.astype(jnp.float32) ** 2, axis=-1))
        return 20.0 * jnp.log(jnp.maximum(rms, 1e-8))
    return jnp.mean(jnp.abs(rms_energy(inp) - rms_energy(tgt)))


if __name__ == "__main__":
    key = jax.random.PRNGKey(0)
    k1, k2, k3, k4 = jax.random.split(key, 4)

    # Case 1: (batch, frames, samples) f32, aligned N.
    shape1 = (2, 8, 128)
    inp1 = jax.random.normal(k1, shape1, dtype=jnp.float32)
    tgt1 = jax.random.normal(k2, shape1, dtype=jnp.float32) * 0.5
    out1 = jax.block_until_ready(rms_energy_error(inp1, tgt1))
    ref1 = _reference(inp1, tgt1)
    assert jnp.allclose(out1, ref1, rtol=1e-5, atol=1e-5), (out1, ref1)

    # Case 2: bf16 inputs, ragged row count (tail mask) and non-128-multiple N.
    shape2 = (3, 5, 96)
    inp2 = (jax.random.normal(k3, shape2, dtype=jnp.float32)).astype(jnp.bfloat16)
    tgt2 = (jax.random.normal(k4, shape2, dtype=jnp.float32) * 0.5).astype(jnp.bfloat16)
    out2 = jax.block_until_ready(rms_energy_error(inp2, tgt2))
    ref2 = _reference(inp2, tgt2)
    assert jnp.allclose(out2, ref2, rtol=1e-4, atol=1e-4), (out2, ref2)

    # Case 3: force multiple grid blocks (tail mask + per-block partials path).
    shape3 = (4, 11, 64)
    inp3 = jax.random.normal(k1, shape3, dtype=jnp.float32)
    tgt3 = jax.random.normal(k2, shape3, dtype=jnp.float32) * 2.0
    out3 = jax.block_until_ready(rms_energy_error(inp3, tgt3, tm=16))
    ref3 = _reference(inp3, tgt3)
    assert jnp.allclose(out3, ref3, rtol=1e-5, atol=1e-5), (out3, ref3)

    # .item() in the torch module returns a Python float
    _ = float(out1)
    _ = float(out2)
    _ = float(out3)
    print("KERNEL_OK")
</pallas_src>

<mosaic_0001>
module attributes {stable_mosaic.version = 11 : i64} {
  func.func @_rms_l1_kernel(%arg0: i32, %arg1: memref<16x128xf32, #tpu.memory_space<vmem>>, %arg2: memref<16x128xf32, #tpu.memory_space<vmem>>, %arg3: memref<1x1xf32, #tpu.memory_space<smem>>) attributes {dimension_semantics = [#tpu.dimension_semantics<parallel>], iteration_bounds = array<i64: 1>, scalar_prefetch = 0 : i64, scratch_operands = 0 : i64, tpu.core_type = #tpu.core_type<tc>, window_params = [{transform_indices = @transform_0, window_bounds = array<i64: 16, 128>}, {transform_indices = @transform_1, window_bounds = array<i64: 16, 128>}, {transform_indices = @transform_2, window_bounds = array<i64: 1, 1>}]} {
    %c0 = arith.constant 0 : index
    %c0_0 = arith.constant 0 : index
    %0 = vector.load %arg1[%c0, %c0_0] : memref<16x128xf32, #tpu.memory_space<vmem>>, vector<16x128xf32>
    %c0_1 = arith.constant 0 : index
    %c0_2 = arith.constant 0 : index
    %1 = vector.load %arg2[%c0_1, %c0_2] : memref<16x128xf32, #tpu.memory_space<vmem>>, vector<16x128xf32>
    %2 = arith.mulf %0, %0 : vector<16x128xf32>
    %cst = arith.constant dense<0.000000e+00> : vector<16xf32>
    %3 = vector.multi_reduction <add>, %2, %cst [1] : vector<16x128xf32> to vector<16xf32>
    %4 = vector.shape_cast %3 : vector<16xf32> to vector<16x1xf32>
    %cst_3 = arith.constant 1.280000e+02 : f32
    %5 = vector.broadcast %cst_3 : f32 to vector<16x1xf32>
    %6 = arith.divf %4, %5 : vector<16x1xf32>
    %7 = arith.mulf %1, %1 : vector<16x128xf32>
    %cst_4 = arith.constant dense<0.000000e+00> : vector<16xf32>
    %8 = vector.multi_reduction <add>, %7, %cst_4 [1] : vector<16x128xf32> to vector<16xf32>
    %9 = vector.shape_cast %8 : vector<16xf32> to vector<16x1xf32>
    %cst_5 = arith.constant 1.280000e+02 : f32
    %10 = vector.broadcast %cst_5 : f32 to vector<16x1xf32>
    %11 = arith.divf %9, %10 : vector<16x1xf32>
    %cst_6 = arith.constant 1.000000e-16 : f32
    %12 = vector.broadcast %cst_6 : f32 to vector<16x1xf32>
    %13 = arith.maximumf %6, %12 : vector<16x1xf32>
    %14 = math.log %13 : vector<16x1xf32>
    %cst_7 = arith.constant 1.000000e+01 : f32
    %15 = vector.broadcast %cst_7 : f32 to vector<16x1xf32>
    %16 = arith.mulf %15, %14 : vector<16x1xf32>
    %cst_8 = arith.constant 1.000000e-16 : f32
    %17 = vector.broadcast %cst_8 : f32 to vector<16x1xf32>
    %18 = arith.maximumf %11, %17 : vector<16x1xf32>
    %19 = math.log %18 : vector<16x1xf32>
    %cst_9 = arith.constant 1.000000e+01 : f32
    %20 = vector.broadcast %cst_9 : f32 to vector<16x1xf32>
    %21 = arith.mulf %20, %19 : vector<16x1xf32>
    %22 = arith.subf %16, %21 : vector<16x1xf32>
    %23 = math.absf %22 : vector<16x1xf32>
    %c16_i32 = arith.constant 16 : i32
    %24 = arith.muli %arg0, %c16_i32 : i32
    %25 = tpu.iota {dimensions = array<i32: 0>} : vector<16x1xi32>
    %26 = vector.broadcast %24 : i32 to vector<16x1xi32>
    %27 = arith.addi %26, %25 : vector<16x1xi32>
    %c16_i32_10 = arith.constant 16 : i32
    %28 = vector.broadcast %c16_i32_10 : i32 to vector<16x1xi32>
    %29 = arith.cmpi slt, %27, %28 : vector<16x1xi32>
    %cst_11 = arith.constant 0.000000e+00 : f32
    %30 = vector.broadcast %cst_11 : f32 to vector<16x1xf32>
    %31 = arith.select %29, %23, %30 : vector<16x1xi1>, vector<16x1xf32>
    %32 = vector.shape_cast %31 : vector<16x1xf32> to vector<1x16x1xf32>
    %cst_12 = arith.constant dense<0.000000e+00> : vector<1xf32>
    %33 = vector.multi_reduction <add>, %32, %cst_12 [1, 2] : vector<1x16x1xf32> to vector<1xf32>
    %34 = vector.shape_cast %33 : vector<1xf32> to vector<1x1x1xf32>
    %35 = vector.extract %34[0, 0, 0] : f32 from vector<1x1x1xf32>
    %c0_13 = arith.constant 0 : index
    %c0_14 = arith.constant 0 : index
    %36 = memref.load %arg3[%c0_13, %c0_14] : memref<1x1xf32, #tpu.memory_space<smem>>
    memref.store %35, %arg3[%c0_13, %c0_14] : memref<1x1xf32, #tpu.memory_space<smem>>
    return
  }
  func.func @transform_0(%arg0: i32) -> (i32, i32) {
    %c0_i32 = arith.constant 0 : i32
    %c0_i32_0 = arith.constant 0 : i32
    return %arg0, %c0_i32 : i32, i32
  }
  func.func @transform_1(%arg0: i32) -> (i32, i32) {
    %c0_i32 = arith.constant 0 : i32
    %c0_i32_0 = arith.constant 0 : i32
    return %arg0, %c0_i32 : i32, i32
  }
  func.func @transform_2(%arg0: i32) -> (i32, i32) {
    %c0_i32 = arith.constant 0 : i32
    %c0_i32_0 = arith.constant 0 : i32
    return %arg0, %c0_i32 : i32, i32
  }
}

</mosaic_0001>

<llo_original>
// kernel: _rms_energy_error_sum.1
$region0: #{_rms_energy_error_sum.1}
  #allocation0 [shape = 'u32[]', space=smem, size = 0x4, offset = 0x4, fixed_abs, tag = 'smem constant byte address 0x4 - core index']
  #allocation1 [shape = 'u32[144,128]{1,0:T(1,128)}', space=vmem, size = 0x12000, scoped, tag = 'internal scratch']
  %s0 = inlined_call_operand.hbm [shape: f32[16,128], index: 0, kind: input, shape index: {}]
  %s1 = inlined_call_operand.hbm [shape: f32[16,128], index: 1, kind: input, shape index: {}]
  %s2 = inlined_call_operand.hbm [shape: f32[1,1], index: 2, kind: output, shape index: {}]
  %s3 = sld [smem:[#allocation0]]
  $region26: #{_rms_energy_error_sum.1} parent=0
    _
  %s5 = ssub.s32 1, %s3
  %s6 = scalar_select 0, %s5, %s3
  $region1: #{_rms_energy_error_sum.1} parent=0
    #allocation2 [shape = 'u8[8192]{0}', space=vmem, size = 0x2000, scoped, tag = 'input window, operand 0, single buffered']
    #allocation3 [shape = 's32[1]{0}', space=sflag, size = 0x4, scoped, tag = 'scoped memory for _rms_energy_error_sum.1']
    #allocation4 [shape = 's32[1]{0}', space=sflag, size = 0x4, scoped, tag = 'scoped memory for _rms_energy_error_sum.1']
    #allocation5 [shape = 'u8[8192]{0}', space=vmem, size = 0x2000, scoped, tag = 'input window, operand 1, single buffered']
    #allocation6 [shape = 's32[1]{0}', space=sflag, size = 0x4, scoped, tag = 'scoped memory for _rms_energy_error_sum.1']
    #allocation7 [shape = 'u8[512]{0}', space=smem, size = 0x200, scoped, tag = 'output window, operand 0, single buffered']
    %7 = vsyncpa [#allocation3], 0
    %8 = vsyncpa [#allocation6], 0
    %9 = vsyncpa [#allocation4], 0
    // Predicated region
    $region2: #{_rms_energy_error_sum.1} parent=1 // pred_check
      _
    $region3: #{_rms_energy_error_sum.1} parent=1 // pred_check_branch
      %11 = sbr.rel (0) target = $region5
    $region4: #{_rms_energy_error_sum.1} parent=1 // pred_region
      %s13 = ssub.s32 256, 256
      %14 = vsyncadd [#allocation3], %s13
      %s15 = sshll.u32 [#allocation2], 4
      %s16 = int_to_ptr.vmem [resolvable:$true] %s15
      %21 = dma.hbm_to_vmem [thread:$0]  %s0, 256, %s16, [#allocation3], 128, 128, 8
    $region5: #{_rms_energy_error_sum.1} parent=1 // pred_fallthru
      _
    // Predicated region
    $region6: #{_rms_energy_error_sum.1} parent=1 // pred_check
      _
    $region7: #{_rms_energy_error_sum.1} parent=1 // pred_check_branch
      %23 = sbr.rel (0) target = $region9
    $region8: #{_rms_energy_error_sum.1} parent=1 // pred_region
      %s25 = ssub.s32 256, 256
      %26 = vsyncadd [#allocation6], %s25
      %s27 = sshll.u32 [#allocation5], 4
      %s28 = int_to_ptr.vmem [resolvable:$true] %s27
      %33 = dma.hbm_to_vmem [thread:$0]  %s1, 256, %s28, [#allocation6], 128, 128, 8
    $region9: #{_rms_energy_error_sum.1} parent=1 // pred_fallthru
      _
    // Predicated region
    $region10: #{_rms_energy_error_sum.1} parent=1 // pred_check
      _
    $region11: #{_rms_energy_error_sum.1} parent=1 // pred_check_branch
      %35 = sbr.rel (0) target = $region13
    $region12: #{_rms_energy_error_sum.1} parent=1 // pred_region
      %36 = dma.done [#allocation3], 256
    $region13: #{_rms_energy_error_sum.1} parent=1 // pred_fallthru
      _
    // Predicated region
    $region14: #{_rms_energy_error_sum.1} parent=1 // pred_check
      _
    $region15: #{_rms_energy_error_sum.1} parent=1 // pred_check_branch
      %38 = sbr.rel (0) target = $region17
    $region16: #{_rms_energy_error_sum.1} parent=1 // pred_region
      %39 = dma.done [#allocation6], 256
    $region17: #{_rms_energy_error_sum.1} parent=1 // pred_fallthru
      _
    %v40 = vld [vmem:[#allocation2] sm:$0xff]
    %v41 = vld [vmem:[#allocation2 + $0x8] sm:$0xff]
    %v42 = vld [vmem:[#allocation5] sm:$0xff]
    %v43 = vld [vmem:[#allocation5 + $0x8] sm:$0xff]
    %v44 = vmul.f32 %v40, %v40
    %v45 = vmul.f32 %v41, %v41
    %46 = vadd.xlane.f32.xlu0 %v44
    %v47 = vpop.xlane.xlu0 %46
    %48 = vadd.xlane.f32.xlu0 %v45
    %v49 = vpop.xlane.xlu0 %48
    %v50 = vrcp.pop 128.0
    %v51 = vmul.f32 %v47, %v50
    %v52 = vmul.f32 %v49, %v50
    %v53 = vmul.f32 %v42, %v42
    %v54 = vmul.f32 %v43, %v43
    %55 = vadd.xlane.f32.xlu0 %v53
    %v56 = vpop.xlane.xlu0 %55
    %57 = vadd.xlane.f32.xlu0 %v54
    %v58 = vpop.xlane.xlu0 %57
    %v59 = vmul.f32 %v56, %v50
    %v60 = vmul.f32 %v58, %v50
    %v61 = vmax.f32 %v51, 1e-16
    %v62 = vmax.f32 %v52, 1e-16
    %v63 = vlog2.pop %v61
    %v64 = vmul.f32 %v63, 0.6931472
    %v65 = vlog2.pop %v62
    %v66 = vmul.f32 %v65, 0.6931472
    %v67 = vmul.f32 %v64, 10.0
    %v68 = vmul.f32 %v66, 10.0
    %v69 = vmax.f32 %v59, 1e-16
    %v70 = vmax.f32 %v60, 1e-16
    %v71 = vlog2.pop %v69
    %v72 = vmul.f32 %v71, 0.6931472
    %v73 = vlog2.pop %v70
    %v74 = vmul.f32 %v73, 0.6931472
    %v75 = vmul.f32 %v72, 10.0
    %v76 = vmul.f32 %v74, 10.0
    %v77 = vsub.f32 %v67, %v75
    %v78 = vsub.f32 %v68, %v76
    %v79 = vand.u32 2147483647, %v77
    %v80 = vand.u32 2147483647, %v78
    %s81 = smul.u32 0, 16
    %v82 = vlaneseq
    %v83 = vshrl.u32 %v82, 7
    %v84 = vadd.s32 %v83, 8
    %v85 = vstv %s81
    %v86 = vadd.s32 %v85, %v83
    %v87 = vadd.s32 %v85, %v84
    %vm88 = vcmp.lt.s32.totalorder %v86, 16
    %vm89 = vcmp.lt.s32.totalorder %v87, 16
    %v90 = vsel %vm88, %v79, 0.0
    %v91 = vsel %vm89, %v80, 0.0
    %vm92 = vcmask 7168
    %v93 = vsel %vm92, %v90, 0.0
    %v94 = vsel %vm92, %v91, 0.0
    %v95 = vadd.f32 %v93, %v94
    %96 = vadd.xlane.f32.xlu0 %v95
    %v97 = vpop.xlane.xlu0 %96
    %v98 = vrot.slane %v97, 4
    %v99 = vadd.f32 %v97, %v98
    %v100 = vrot.slane %v99, 2
    %v101 = vadd.f32 %v99, %v100
    %v102 = vrot.slane %v101, 1
    %v103 = vadd.f32 %v101, %v102
    %s104 = vtos %v103
    %s105 = scalar_lea.smem [#allocation7], 0
    %106 = sst [smem:[%s105]] %s104
    // Predicated region
    $region18: #{_rms_energy_error_sum.1} parent=1 // pred_check
      _
    $region19: #{_rms_energy_error_sum.1} parent=1 // pred_check_branch
      %108 = sbr.rel (0) target = $region21
    $region20: #{_rms_energy_error_sum.1} parent=1 // pred_region
      %s110 = ssub.s32 16, 16
      %111 = vsyncadd [#allocation4], %s110
      %114 = dma.smem_to_hbm [#allocation7], 16, %s2, [#allocation4]
    $region21: #{_rms_energy_error_sum.1} parent=1 // pred_fallthru
      _
    // Predicated region
    $region22: #{_rms_energy_error_sum.1} parent=1 // pred_check
      _
    $region23: #{_rms_energy_error_sum.1} parent=1 // pred_check_branch
      %116 = sbr.rel (0) target = $region25
    $region24: #{_rms_energy_error_sum.1} parent=1 // pred_region
      %117 = dma.done [#allocation4], 16
    $region25: #{_rms_energy_error_sum.1} parent=1 // pred_fallthru
      _
    %118 = sfence
    %119 = vsyncpa [#allocation3], 1
    %120 = vsyncpa [#allocation6], 1
    %121 = vsyncpa [#allocation4], 1

</llo_original>
